<compile_context>
chip_gen: v5e
topology: v5e:2x2
jax: 0.10.0
libtpu: 0.0.40
codegen_flags: <defaults>
</compile_context>

<pallas_src>
import math

import jax
import jax.numpy as jnp
from jax.experimental import pallas as pl
from jax.experimental.pallas import tpu as pltpu


def mlp_kernel(x_ref, *refs):
    """refs = (w0, b0, w1, b1, ..., w_{L-1}, b_{L-1}, out_ref).

    Weights are stored transposed, i.e. w_i has shape (d_in_i, d_out_i), and
    biases have shape (1, d_out_i). ReLU after every layer except the last
    (matching nn.Sequential([Linear, ReLU]*k + [Linear])).
    """
    out_ref = refs[-1]
    wb = refs[:-1]
    n_layers = len(wb) // 2

    h = x_ref[...]
    for i in range(n_layers):
        w = wb[2 * i][...]
        b = wb[2 * i + 1][...]
        h = jnp.dot(h, w, preferred_element_type=jnp.float32) + b
        if i < n_layers - 1:
            h = jnp.maximum(h, 0.0)
    out_ref[...] = h.astype(out_ref.dtype)


def _round_up(a, m):
    return (a + m - 1) // m * m


def mlp_embedding_forward(x, params, *, max_row_tile=256):
    """Pallas equivalent of MLP_embedding.forward.

    x: (..., in_dim) float32.  params: dict with "weights" (list of (d_in, d_out)
    transposed weights) and "biases" (list of (1, d_out) biases).
    Returns (..., out_dim).
    """
    lead = x.shape[:-1]
    in_dim = x.shape[-1]
    out_dim = params["weights"][-1].shape[1]

    n = max(1, math.prod(lead))
    xf = x.reshape(n, in_dim).astype(jnp.float32)

    # Row tile: sublane-aligned (multiple of 8), capped, and small enough to
    # give >= 2 parallel grid blocks when possible (v7x has 2 TensorCores).
    rt = min(max_row_tile, max(8, _round_up((n + 1) // 2, 8)))
    n_pad = _round_up(n, rt)
    if n_pad != n:
        xf = jnp.pad(xf, ((0, n_pad - n), (0, 0)))
    grid = (n_pad // rt,)

    def replicated(shape):
        # Full-array block, same tile for every grid step (weights stay resident).
        return pl.BlockSpec(shape, lambda i, _s=shape: (0,) * len(_s))

    in_specs = [pl.BlockSpec((rt, in_dim), lambda i: (i, 0))]
    flat_args = [xf]
    for w, b in zip(params["weights"], params["biases"]):
        in_specs.append(replicated(w.shape))
        in_specs.append(replicated(b.shape))
        flat_args.append(w)
        flat_args.append(b)

    out = pl.pallas_call(
        mlp_kernel,
        out_shape=jax.ShapeDtypeStruct((n_pad, out_dim), jnp.float32),
        grid=grid,
        in_specs=in_specs,
        out_specs=pl.BlockSpec((rt, out_dim), lambda i: (i, 0)),
        compiler_params=pltpu.CompilerParams(
            dimension_semantics=("parallel",)),
    )(*flat_args)

    return out[:n].reshape(*lead, out_dim)


def reference_forward(x, params):
    """Pure-JAX reference mirroring the PyTorch forward."""
    lead = x.shape[:-1]
    h = x.reshape(-1, x.shape[-1])
    n_layers = len(params["weights"])
    for i, (w, b) in enumerate(zip(params["weights"], params["biases"])):
        h = h @ w + b
        if i < n_layers - 1:
            h = jnp.maximum(h, 0.0)
    return h.reshape(*lead, h.shape[-1])


def make_params(key, in_dim, out_dim, hidden_list):
    """Mirror nn.Linear default init (uniform(+-1/sqrt(fan_in)) for W and b)."""
    dims = [in_dim] + list(hidden_list) + [out_dim]
    n_layers = len(dims) - 1
    ks = jax.random.split(key, 2 * n_layers)
    weights, biases = [], []
    for li in range(n_layers):
        fan_in, fan_out = dims[li], dims[li + 1]
        bound = 1.0 / math.sqrt(fan_in)
        # Stored transposed: (fan_in, fan_out) so the kernel does x @ w.
        w = jax.random.uniform(ks[2 * li], (fan_in, fan_out), jnp.float32,
                               -bound, bound)
        b = jax.random.uniform(ks[2 * li + 1], (1, fan_out), jnp.float32,
                               -bound, bound)
        weights.append(w)
        biases.append(b)
    return {"weights": weights, "biases": biases}


if __name__ == "__main__":
    key = jax.random.PRNGKey(0)
    k_x, k_p = jax.random.split(key)

    in_dim, out_dim = 32, 32
    hidden_list = [64, 64]
    batch, seq = 2, 8

    x = jax.random.normal(k_x, (batch, seq, in_dim), jnp.float32)
    params = make_params(k_p, in_dim, out_dim, hidden_list)

    out = jax.block_until_ready(mlp_embedding_forward(x, params))
    ref = jax.block_until_ready(reference_forward(x, params))

    assert out.shape == (batch, seq, out_dim), out.shape
    assert jnp.allclose(out, ref, atol=1e-4, rtol=1e-4), \
        "Pallas output mismatch vs JAX reference"

    print("KERNEL_OK")
</pallas_src>

<mosaic_0001>
module attributes {stable_mosaic.version = 11 : i64} {
  func.func @mlp_kernel(%arg0: i32, %arg1: memref<8x32xf32, #tpu.memory_space<vmem>>, %arg2: memref<32x64xf32, #tpu.memory_space<vmem>>, %arg3: memref<1x64xf32, #tpu.memory_space<vmem>>, %arg4: memref<64x64xf32, #tpu.memory_space<vmem>>, %arg5: memref<1x64xf32, #tpu.memory_space<vmem>>, %arg6: memref<64x32xf32, #tpu.memory_space<vmem>>, %arg7: memref<1x32xf32, #tpu.memory_space<vmem>>, %arg8: memref<8x32xf32, #tpu.memory_space<vmem>>) attributes {dimension_semantics = [#tpu.dimension_semantics<parallel>], iteration_bounds = array<i64: 2>, scalar_prefetch = 0 : i64, scratch_operands = 0 : i64, tpu.core_type = #tpu.core_type<tc>, window_params = [{transform_indices = @transform_0, window_bounds = array<i64: 8, 32>}, {pipeline_mode = #tpu.pipeline_mode<synchronous>, transform_indices = @transform_1, window_bounds = array<i64: 32, 64>}, {pipeline_mode = #tpu.pipeline_mode<synchronous>, transform_indices = @transform_2, window_bounds = array<i64: 1, 64>}, {pipeline_mode = #tpu.pipeline_mode<synchronous>, transform_indices = @transform_3, window_bounds = array<i64: 64, 64>}, {pipeline_mode = #tpu.pipeline_mode<synchronous>, transform_indices = @transform_4, window_bounds = array<i64: 1, 64>}, {pipeline_mode = #tpu.pipeline_mode<synchronous>, transform_indices = @transform_5, window_bounds = array<i64: 64, 32>}, {pipeline_mode = #tpu.pipeline_mode<synchronous>, transform_indices = @transform_6, window_bounds = array<i64: 1, 32>}, {transform_indices = @transform_7, window_bounds = array<i64: 8, 32>}]} {
    %c0 = arith.constant 0 : index
    %c0_0 = arith.constant 0 : index
    %0 = vector.load %arg1[%c0, %c0_0] : memref<8x32xf32, #tpu.memory_space<vmem>>, vector<8x32xf32>
    %c0_1 = arith.constant 0 : index
    %c0_2 = arith.constant 0 : index
    %1 = vector.load %arg2[%c0_1, %c0_2] : memref<32x64xf32, #tpu.memory_space<vmem>>, vector<32x64xf32>
    %c0_3 = arith.constant 0 : index
    %c0_4 = arith.constant 0 : index
    %2 = vector.load %arg3[%c0_3, %c0_4] : memref<1x64xf32, #tpu.memory_space<vmem>>, vector<1x64xf32>
    %cst = arith.constant dense<0.000000e+00> : vector<8x64xf32>
    %3 = tpu.matmul %0, %1, %cst {dimension_numbers = #tpu.dot_dimension_numbers<[1], [0], [0], [1], [0, 0, 1, 1], [], []>} : vector<8x32xf32>, vector<32x64xf32>, vector<8x64xf32> -> vector<8x64xf32>
    %4 = vector.broadcast %2 : vector<1x64xf32> to vector<8x64xf32>
    %5 = arith.addf %3, %4 : vector<8x64xf32>
    %cst_5 = arith.constant 0.000000e+00 : f32
    %6 = vector.broadcast %cst_5 : f32 to vector<8x64xf32>
    %7 = arith.maximumf %5, %6 : vector<8x64xf32>
    %c0_6 = arith.constant 0 : index
    %c0_7 = arith.constant 0 : index
    %8 = vector.load %arg4[%c0_6, %c0_7] : memref<64x64xf32, #tpu.memory_space<vmem>>, vector<64x64xf32>
    %c0_8 = arith.constant 0 : index
    %c0_9 = arith.constant 0 : index
    %9 = vector.load %arg5[%c0_8, %c0_9] : memref<1x64xf32, #tpu.memory_space<vmem>>, vector<1x64xf32>
    %cst_10 = arith.constant dense<0.000000e+00> : vector<8x64xf32>
    %10 = tpu.matmul %7, %8, %cst_10 {dimension_numbers = #tpu.dot_dimension_numbers<[1], [0], [0], [1], [0, 0, 1, 1], [], []>} : vector<8x64xf32>, vector<64x64xf32>, vector<8x64xf32> -> vector<8x64xf32>
    %11 = vector.broadcast %9 : vector<1x64xf32> to vector<8x64xf32>
    %12 = arith.addf %10, %11 : vector<8x64xf32>
    %cst_11 = arith.constant 0.000000e+00 : f32
    %13 = vector.broadcast %cst_11 : f32 to vector<8x64xf32>
    %14 = arith.maximumf %12, %13 : vector<8x64xf32>
    %c0_12 = arith.constant 0 : index
    %c0_13 = arith.constant 0 : index
    %15 = vector.load %arg6[%c0_12, %c0_13] : memref<64x32xf32, #tpu.memory_space<vmem>>, vector<64x32xf32>
    %c0_14 = arith.constant 0 : index
    %c0_15 = arith.constant 0 : index
    %16 = vector.load %arg7[%c0_14, %c0_15] : memref<1x32xf32, #tpu.memory_space<vmem>>, vector<1x32xf32>
    %cst_16 = arith.constant dense<0.000000e+00> : vector<8x32xf32>
    %17 = tpu.matmul %14, %15, %cst_16 {dimension_numbers = #tpu.dot_dimension_numbers<[1], [0], [0], [1], [0, 0, 1, 1], [], []>} : vector<8x64xf32>, vector<64x32xf32>, vector<8x32xf32> -> vector<8x32xf32>
    %18 = vector.broadcast %16 : vector<1x32xf32> to vector<8x32xf32>
    %19 = arith.addf %17, %18 : vector<8x32xf32>
    %c0_17 = arith.constant 0 : index
    %c0_18 = arith.constant 0 : index
    %20 = vector.load %arg8[%c0_17, %c0_18] : memref<8x32xf32, #tpu.memory_space<vmem>>, vector<8x32xf32>
    tpu.vector_store %arg8[%c0_17, %c0_18], %19 {strides = array<i32>} : memref<8x32xf32, #tpu.memory_space<vmem>>, vector<8x32xf32>,
    return
  }
  func.func @transform_0(%arg0: i32) -> (i32, i32) {
    %c0_i32 = arith.constant 0 : i32
    %c0_i32_0 = arith.constant 0 : i32
    return %arg0, %c0_i32 : i32, i32
  }
  func.func @transform_1(%arg0: i32) -> (i32, i32) {
    %c0_i32 = arith.constant 0 : i32
    %c0_i32_0 = arith.constant 0 : i32
    %c0_i32_1 = arith.constant 0 : i32
    return %c0_i32, %c0_i32_0 : i32, i32
  }
  func.func @transform_2(%arg0: i32) -> (i32, i32) {
    %c0_i32 = arith.constant 0 : i32
    %c0_i32_0 = arith.constant 0 : i32
    %c0_i32_1 = arith.constant 0 : i32
    return %c0_i32, %c0_i32_0 : i32, i32
  }
  func.func @transform_3(%arg0: i32) -> (i32, i32) {
    %c0_i32 = arith.constant 0 : i32
    %c0_i32_0 = arith.constant 0 : i32
    %c0_i32_1 = arith.constant 0 : i32
    return %c0_i32, %c0_i32_0 : i32, i32
  }
  func.func @transform_4(%arg0: i32) -> (i32, i32) {
    %c0_i32 = arith.constant 0 : i32
    %c0_i32_0 = arith.constant 0 : i32
    %c0_i32_1 = arith.constant 0 : i32
    return %c0_i32, %c0_i32_0 : i32, i32
  }
  func.func @transform_5(%arg0: i32) -> (i32, i32) {
    %c0_i32 = arith.constant 0 : i32
    %c0_i32_0 = arith.constant 0 : i32
    %c0_i32_1 = arith.constant 0 : i32
    return %c0_i32, %c0_i32_0 : i32, i32
  }
  func.func @transform_6(%arg0: i32) -> (i32, i32) {
    %c0_i32 = arith.constant 0 : i32
    %c0_i32_0 = arith.constant 0 : i32
    %c0_i32_1 = arith.constant 0 : i32
    return %c0_i32, %c0_i32_0 : i32, i32
  }
  func.func @transform_7(%arg0: i32) -> (i32, i32) {
    %c0_i32 = arith.constant 0 : i32
    %c0_i32_0 = arith.constant 0 : i32
    return %arg0, %c0_i32 : i32, i32
  }
}

</mosaic_0001>

<llo_original>
// kernel: tpu_custom_call.1
$region0: #{tpu_custom_call.1}
  #allocation0 [shape = 'u32[]', space=smem, size = 0x4, offset = 0x4, fixed_abs, tag = 'smem constant byte address 0x4 - core index']
  #allocation1 [shape = 'u32[72,128]{1,0:T(1,128)}', space=vmem, size = 0x9000, scoped, tag = 'internal scratch']
  %s0 = inlined_call_operand.hbm [shape: f32[16,32], index: 0, kind: input, shape index: {}]
  %s1 = inlined_call_operand.vmem [shape: f32[32,64], index: 1, kind: input, shape index: {}]
  %s2 = inlined_call_operand.vmem [shape: f32[1,64], index: 2, kind: input, shape index: {}]
  %s3 = inlined_call_operand.vmem [shape: f32[64,64], index: 3, kind: input, shape index: {}]
  %s4 = inlined_call_operand.vmem [shape: f32[1,64], index: 4, kind: input, shape index: {}]
  %s5 = inlined_call_operand.vmem [shape: f32[64,32], index: 5, kind: input, shape index: {}]
  %s6 = inlined_call_operand.vmem [shape: f32[1,32], index: 6, kind: input, shape index: {}]
  %s7 = inlined_call_operand.hbm [shape: f32[16,32], index: 7, kind: output, shape index: {}]
  %s8 = sld [smem:[#allocation0]]
  $region65: #{tpu_custom_call.1} parent=0
    _
  %s10 = ssub.s32 1, %s8
  %s11 = scalar_select 0, %s10, %s8
  $region1: #{tpu_custom_call.1} parent=0
    #allocation2 [shape = 'u8[8192]{0}', space=vmem, size = 0x2000, scoped, tag = 'input window, operand 0']
    #allocation3 [shape = 's32[2]{0}', space=sflag, size = 0x8, scoped, tag = 'scoped memory for tpu_custom_call.1']
    #allocation4 [shape = 's32[2]{0}', space=sflag, size = 0x8, scoped, tag = 'scoped memory for tpu_custom_call.1']
    #allocation5 [shape = 'u8[8192]{0}', space=vmem, size = 0x2000, scoped, tag = 'output window, operand 0']
    %12 = vsyncpa [#allocation3], 0
    %s13 = scalar_lea.sflag [#allocation3], 1
    %14 = vsyncpa %s13, 0
    %15 = vsyncpa [#allocation4], 0
    %s16 = scalar_lea.sflag [#allocation4], 1
    %17 = vsyncpa %s16, 0
    loop: start=0, step=1, limit=4
    $region2: #{tpu_custom_call.1} parent=1 // loop_pre_header
      _
    $region3: #{tpu_custom_call.1} parent=1 // loop_header
      %s19 = sphi 0, %s23
      %p20 = scmp.ge.s32.totalorder %s19, 4
      %s29 = sphi 0, %s31
      %s32 = sphi 0, %s29
      %s33 = sphi 0, %s32
      %s49 = sphi 0, %s33
      %s53 = sphi 0, %s53
      %s55 = sphi 0, %s53
      %s56 = sphi 0, %s55
      %s70 = sphi 0, %s56
      %s74 = sphi 0, %s74
      %s76 = sphi 0, %s74
      %s77 = sphi 0, %s76
      %s91 = sphi 0, %s77
      %s95 = sphi 0, %s95
      %s97 = sphi 0, %s95
      %s98 = sphi 0, %s97
      %s112 = sphi 0, %s98
      %s116 = sphi 0, %s116
      %s118 = sphi 0, %s116
      %s119 = sphi 0, %s118
      %s133 = sphi 0, %s119
      %s137 = sphi 0, %s137
      %s139 = sphi 0, %s137
      %s140 = sphi 0, %s139
      %s154 = sphi 0, %s140
      %s158 = sphi 0, %s158
      %s160 = sphi 0, %s158
      %s161 = sphi 0, %s160
      %s175 = sphi 0, %s161
      %s181 = sphi 0, %s183
      %s184 = sphi 0, %s181
      %s185 = sphi 0, %s184
      %s201 = sphi 0, %s185
    $region4: #{tpu_custom_call.1} parent=1 // loop_header_branch
      %22 = sbr.rel (%p20) target = $region8
    $region5: #{tpu_custom_call.1} parent=1 // loop_body
      %s24 = ssub.s32 %s19, 1
      %s25 = ssub.s32 %s19, 2
      %s26 = sadd.s32 %s19, 1
      %s27 = ssub.s32 %s19, %s26
      %p28 = scmp.eq.s32.totalorder %s27, 0
      %s30 = sadd.s32 %s29, 1
      %s31 = scalar_select %p28, %s29, %s30
      %p34 = pneg %p28
      %p35 = scmp.eq.s32.totalorder %s19, 1
      %p36 = por %p34, %p35
      %p37 = scmp.ne.s32.totalorder %s29, %s32
      %p38 = scmp.eq.s32.totalorder %s19, 0
      %p39 = por %p37, %p38
      %p40 = scmp.ne.s32.totalorder %s29, %s32
      %p41 = scmp.eq.s32.totalorder %s24, 1
      %p42 = por %p40, %p41
      %p43 = scmp.ne.s32.totalorder %s32, %s33
      %p44 = scmp.eq.s32.totalorder %s24, 0
      %p45 = por %p43, %p44
      %p46 = scmp.ne.s32.totalorder %s32, %s33
      %p47 = scmp.eq.s32.totalorder %s25, 1
      %p48 = por %p46, %p47
      %p50 = scmp.ne.s32.totalorder %s33, %s49
      %p51 = scmp.eq.s32.totalorder %s25, 0
      %p52 = por %p50, %p51
      %s54 = sadd.s32 %s53, 1
      %p57 = scmp.eq.s32.totalorder %s19, 1
      %p58 = scmp.ne.s32.totalorder %s53, %s55
      %p59 = scmp.eq.s32.totalorder %s19, 0
      %p60 = por %p58, %p59
      %p61 = scmp.ne.s32.totalorder %s53, %s55
      %p62 = scmp.eq.s32.totalorder %s24, 1
      %p63 = por %p61, %p62
      %p64 = scmp.ne.s32.totalorder %s55, %s56
      %p65 = scmp.eq.s32.totalorder %s24, 0
      %p66 = por %p64, %p65
      %p67 = scmp.ne.s32.totalorder %s55, %s56
      %p68 = scmp.eq.s32.totalorder %s25, 1
      %p69 = por %p67, %p68
      %p71 = scmp.ne.s32.totalorder %s56, %s70
      %p72 = scmp.eq.s32.totalorder %s25, 0
      %p73 = por %p71, %p72
      %s75 = sadd.s32 %s74, 1
      %p78 = scmp.eq.s32.totalorder %s19, 1
      %p79 = scmp.ne.s32.totalorder %s74, %s76
      %p80 = scmp.eq.s32.totalorder %s19, 0
      %p81 = por %p79, %p80
      %p82 = scmp.ne.s32.totalorder %s74, %s76
      %p83 = scmp.eq.s32.totalorder %s24, 1
      %p84 = por %p82, %p83
      %p85 = scmp.ne.s32.totalorder %s76, %s77
      %p86 = scmp.eq.s32.totalorder %s24, 0
      %p87 = por %p85, %p86
      %p88 = scmp.ne.s32.totalorder %s76, %s77
      %p89 = scmp.eq.s32.totalorder %s25, 1
      %p90 = por %p88, %p89
      %p92 = scmp.ne.s32.totalorder %s77, %s91
      %p93 = scmp.eq.s32.totalorder %s25, 0
      %p94 = por %p92, %p93
      %s96 = sadd.s32 %s95, 1
      %p99 = scmp.eq.s32.totalorder %s19, 1
      %p100 = scmp.ne.s32.totalorder %s95, %s97
      %p101 = scmp.eq.s32.totalorder %s19, 0
      %p102 = por %p100, %p101
      %p103 = scmp.ne.s32.totalorder %s95, %s97
      %p104 = scmp.eq.s32.totalorder %s24, 1
      %p105 = por %p103, %p104
      %p106 = scmp.ne.s32.totalorder %s97, %s98
      %p107 = scmp.eq.s32.totalorder %s24, 0
      %p108 = por %p106, %p107
      %p109 = scmp.ne.s32.totalorder %s97, %s98
      %p110 = scmp.eq.s32.totalorder %s25, 1
      %p111 = por %p109, %p110
      %p113 = scmp.ne.s32.totalorder %s98, %s112
      %p114 = scmp.eq.s32.totalorder %s25, 0
      %p115 = por %p113, %p114
      %s117 = sadd.s32 %s116, 1
      %p120 = scmp.eq.s32.totalorder %s19, 1
      %p121 = scmp.ne.s32.totalorder %s116, %s118
      %p122 = scmp.eq.s32.totalorder %s19, 0
      %p123 = por %p121, %p122
      %p124 = scmp.ne.s32.totalorder %s116, %s118
      %p125 = scmp.eq.s32.totalorder %s24, 1
      %p126 = por %p124, %p125
      %p127 = scmp.ne.s32.totalorder %s118, %s119
      %p128 = scmp.eq.s32.totalorder %s24, 0
      %p129 = por %p127, %p128
      %p130 = scmp.ne.s32.totalorder %s118, %s119
      %p131 = scmp.eq.s32.totalorder %s25, 1
      %p132 = por %p130, %p131
      %p134 = scmp.ne.s32.totalorder %s119, %s133
      %p135 = scmp.eq.s32.totalorder %s25, 0
      %p136 = por %p134, %p135
      %s138 = sadd.s32 %s137, 1
      %p141 = scmp.eq.s32.totalorder %s19, 1
      %p142 = scmp.ne.s32.totalorder %s137, %s139
      %p143 = scmp.eq.s32.totalorder %s19, 0
      %p144 = por %p142, %p143
      %p145 = scmp.ne.s32.totalorder %s137, %s139
      %p146 = scmp.eq.s32.totalorder %s24, 1
      %p147 = por %p145, %p146
      %p148 = scmp.ne.s32.totalorder %s139, %s140
      %p149 = scmp.eq.s32.totalorder %s24, 0
      %p150 = por %p148, %p149
      %p151 = scmp.ne.s32.totalorder %s139, %s140
      %p152 = scmp.eq.s32.totalorder %s25, 1
      %p153 = por %p151, %p152
      %p155 = scmp.ne.s32.totalorder %s140, %s154
      %p156 = scmp.eq.s32.totalorder %s25, 0
      %p157 = por %p155, %p156
      %s159 = sadd.s32 %s158, 1
      %p162 = scmp.eq.s32.totalorder %s19, 1
      %p163 = scmp.ne.s32.totalorder %s158, %s160
      %p164 = scmp.eq.s32.totalorder %s19, 0
      %p165 = por %p163, %p164
      %p166 = scmp.ne.s32.totalorder %s158, %s160
      %p167 = scmp.eq.s32.totalorder %s24, 1
      %p168 = por %p166, %p167
      %p169 = scmp.ne.s32.totalorder %s160, %s161
      %p170 = scmp.eq.s32.totalorder %s24, 0
      %p171 = por %p169, %p170
      %p172 = scmp.ne.s32.totalorder %s160, %s161
      %p173 = scmp.eq.s32.totalorder %s25, 1
      %p174 = por %p172, %p173
      %p176 = scmp.ne.s32.totalorder %s161, %s175
      %p177 = scmp.eq.s32.totalorder %s25, 0
      %p178 = por %p176, %p177
      %s179 = ssub.s32 %s19, %s26
      %p180 = scmp.eq.s32.totalorder %s179, 0
      %s182 = sadd.s32 %s181, 1
      %s183 = scalar_select %p180, %s181, %s182
      %p186 = pneg %p180
      %p187 = scmp.eq.s32.totalorder %s19, 1
      %p188 = por %p186, %p187
      %p189 = scmp.ne.s32.totalorder %s181, %s184
      %p190 = scmp.eq.s32.totalorder %s19, 0
      %p191 = por %p189, %p190
      %p192 = scmp.ne.s32.totalorder %s181, %s184
      %p193 = scmp.eq.s32.totalorder %s24, 1
      %p194 = por %p192, %p193
      %p195 = scmp.ne.s32.totalorder %s184, %s185
      %p196 = scmp.eq.s32.totalorder %s24, 0
      %p197 = por %p195, %p196
      %p198 = scmp.ne.s32.totalorder %s184, %s185
      %p199 = scmp.eq.s32.totalorder %s25, 1
      %p200 = por %p198, %p199
      %p202 = scmp.ne.s32.totalorder %s185, %s201
      %p203 = scmp.eq.s32.totalorder %s25, 0
      %p204 = por %p202, %p203
      %p205 = scmp.le.s32.totalorder 1, %s19
      %p206 = scmp.lt.s32.totalorder %s19, 3
      %p207 = pnand %p205, %p206
      %p208 = pneg %p207
      // Predicated region
      $region9: #{tpu_custom_call.1} parent=5 // pred_check
        _
      $region10: #{tpu_custom_call.1} parent=5 // pred_check_branch
        %210 = sbr.rel (%p207) target = $region12
      $region11: #{tpu_custom_call.1} parent=5 // pred_region
        %s211 = ssub.s32 %s19, 1
        // Predicated region
        $region13: #{tpu_custom_call.1} parent=11 // pred_check
          %p212 = pneg %p66
        $region14: #{tpu_custom_call.1} parent=11 // pred_check_branch
          %214 = sbr.rel (%p212) target = $region16
        $region15: #{tpu_custom_call.1} parent=11 // pred_region
          _
        $region16: #{tpu_custom_call.1} parent=11 // pred_fallthru
          _
        // Predicated region
        $region17: #{tpu_custom_call.1} parent=11 // pred_check
          %p215 = pneg %p87
        $region18: #{tpu_custom_call.1} parent=11 // pred_check_branch
          %217 = sbr.rel (%p215) target = $region20
        $region19: #{tpu_custom_call.1} parent=11 // pred_region
          _
        $region20: #{tpu_custom_call.1} parent=11 // pred_fallthru
          _
        // Predicated region
        $region21: #{tpu_custom_call.1} parent=11 // pred_check
          %p218 = pneg %p108
        $region22: #{tpu_custom_call.1} parent=11 // pred_check_branch
          %220 = sbr.rel (%p218) target = $region24
        $region23: #{tpu_custom_call.1} parent=11 // pred_region
          _
        $region24: #{tpu_custom_call.1} parent=11 // pred_fallthru
          _
        // Predicated region
        $region25: #{tpu_custom_call.1} parent=11 // pred_check
          %p221 = pneg %p129
        $region26: #{tpu_custom_call.1} parent=11 // pred_check_branch
          %223 = sbr.rel (%p221) target = $region28
        $region27: #{tpu_custom_call.1} parent=11 // pred_region
          _
        $region28: #{tpu_custom_call.1} parent=11 // pred_fallthru
          _
        // Predicated region
        $region29: #{tpu_custom_call.1} parent=11 // pred_check
          %p224 = pneg %p150
        $region30: #{tpu_custom_call.1} parent=11 // pred_check_branch
          %226 = sbr.rel (%p224) target = $region32
        $region31: #{tpu_custom_call.1} parent=11 // pred_region
          _
        $region32: #{tpu_custom_call.1} parent=11 // pred_fallthru
          _
        // Predicated region
        $region33: #{tpu_custom_call.1} parent=11 // pred_check
          %p227 = pneg %p171
        $region34: #{tpu_custom_call.1} parent=11 // pred_check_branch
          %229 = sbr.rel (%p227) target = $region36
        $region35: #{tpu_custom_call.1} parent=11 // pred_region
          _
        $region36: #{tpu_custom_call.1} parent=11 // pred_fallthru
          _
      $region12: #{tpu_custom_call.1} parent=5 // pred_fallthru
        _
      %p230 = scmp.lt.s32.totalorder %s19, 2
      // Predicated region
      $region37: #{tpu_custom_call.1} parent=5 // pred_check
        %p231 = pneg %p230
      $region38: #{tpu_custom_call.1} parent=5 // pred_check_branch
        %233 = sbr.rel (%p231) target = $region40
      $region39: #{tpu_custom_call.1} parent=5 // pred_region
        // Predicated region
        $region41: #{tpu_custom_call.1} parent=39 // pred_check
          %p234 = pneg %p39
        $region42: #{tpu_custom_call.1} parent=39 // pred_check_branch
          %236 = sbr.rel (%p234) target = $region44
        $region43: #{tpu_custom_call.1} parent=39 // pred_region
          %s237 = sand.u32 %s29, 1
          %s238 = scalar_lea.sflag [#allocation3], %s237
          %s239 = sand.u32 %s29, 1
          %s240 = smul.addr %s239, 8
          %s241 = scalar_lea.vmem [#allocation2], %s240
          %243 = vsyncadd %s238, 0
          %s244 = smul.addr %s19, 8
          %s245 = scalar_lea.hbm %s0, %s244
          %s247 = sshll.u32 %s245, 4
          %s248 = int_to_ptr.hbm [resolvable:$true] %s247
          %s249 = sshll.u32 %s241, 4
          %s250 = int_to_ptr.vmem [resolvable:$true] %s249
          %252 = dma.hbm_to_vmem [thread:$0]  %s248, 128, %s250, %s238
        $region44: #{tpu_custom_call.1} parent=39 // pred_fallthru
          _
      $region40: #{tpu_custom_call.1} parent=5 // pred_fallthru
        _
      %p253 = scmp.le.s32.totalorder 1, %s19
      %p254 = scmp.lt.s32.totalorder %s19, 3
      %p255 = pnand %p253, %p254
      %p256 = pneg %p255
      // Predicated region
      $region45: #{tpu_custom_call.1} parent=5 // pred_check
        _
      $region46: #{tpu_custom_call.1} parent=5 // pred_check_branch
        %258 = sbr.rel (%p255) target = $region48
      $region47: #{tpu_custom_call.1} parent=5 // pred_region
        %s259 = ssub.s32 %s19, 1
        %s260 = sand.u32 %s32, 1
        %s261 = scalar_lea.sflag [#allocation3], %s260
        %s262 = sand.u32 %s32, 1
        %s263 = smul.addr %s262, 8
        %s264 = scalar_lea.vmem [#allocation2], %s263
        // Predicated region
        $region49: #{tpu_custom_call.1} parent=47 // pred_check
          %p265 = pneg %p45
        $region50: #{tpu_custom_call.1} parent=47 // pred_check_branch
          %267 = sbr.rel (%p265) target = $region52
        $region51: #{tpu_custom_call.1} parent=47 // pred_region
          %269 = dma.done %s261, 128
        $region52: #{tpu_custom_call.1} parent=47 // pred_fallthru
          _
        %s270 = sand.u32 %s32, 1
        %s271 = scalar_lea.sflag [#allocation3], %s270
        %s272 = sand.u32 %s32, 1
        %s273 = smul.addr %s272, 8
        %s274 = scalar_lea.vmem [#allocation2], %s273
        %p275 = pneg %p45
        %p276 = pneg %p42
        %p277 = pneg %p66
        %p278 = pneg %p63
        %p279 = pneg %p87
        %p280 = pneg %p84
        %p281 = pneg %p108
        %p282 = pneg %p105
        %p283 = pneg %p129
        %p284 = pneg %p126
        %p285 = pneg %p150
        %p286 = pneg %p147
        %p287 = pneg %p171
        %p288 = pneg %p168
        %p289 = pneg %p197
        %p290 = pneg %p194
        %s291 = sand.u32 %s184, 1
        %s292 = scalar_lea.sflag [#allocation4], %s291
        %s293 = sand.u32 %s184, 1
        %s294 = smul.addr %s293, 8
        %s295 = scalar_lea.vmem [#allocation5], %s294
        %v296 = vld [vmem:[%s264] sm:$0xff]
        %v297 = vld [vmem:[%s1] sm:$0xff]
        %v298 = vld [vmem:[%s1 + $0x8] sm:$0xff]
        %v299 = vld [vmem:[%s1 + $0x10] sm:$0xff]
        %v300 = vld [vmem:[%s1 + $0x18] sm:$0xff]
        %v301 = vld [vmem:[%s2] sm:$0x1]
        %v303 = vperm.slane %v301, 0
        %vm305 = vcmask 261120
        %v307 = vsel %vm305, %v296, 0
        %309 = vmatpush.msra.mxu0 0.0
        %310 = vmatpush.msra.mxu0 0.0
        %311 = vmatpush.msra.mxu0 0.0
        %312 = vmatpush.msra.mxu0 0.0
        %313 = vmatpush.msra.mxu0 0.0
        %314 = vmatpush.msra.mxu0 0.0
        %315 = vmatpush.msra.mxu0 0.0
        %316 = vmatpush.msra.mxu0 0.0
        %317 = vmatpush.msra.mxu0 0.0
        %318 = vmatpush.msra.mxu0 0.0
        %319 = vmatpush.msra.mxu0 0.0
        %320 = vmatpush.msra.mxu0 0.0
        %321 = vmatpush.msra.mxu0 %v300
        %322 = vmatpush.msra.mxu0 %v299
        %323 = vmatpush.msra.mxu0 %v298
        %324 = vmatpush.msra.mxu0 %v297
        %325 = vmatmul.f32.gmra.mxu0 %v307
        %v326 = vpop.f32.mrf.mxu0
        %v327 = vadd.f32 %v303, %v326
        %328 = vdwg.mxu0
        %v329 = vmax.f32 %v327, 0.0
        %v330 = vld [vmem:[%s3] sm:$0xff]
        %v331 = vld [vmem:[%s3 + $0x8] sm:$0xff]
        %v332 = vld [vmem:[%s3 + $0x10] sm:$0xff]
        %v333 = vld [vmem:[%s3 + $0x18] sm:$0xff]
        %v334 = vld [vmem:[%s3 + $0x20] sm:$0xff]
        %v335 = vld [vmem:[%s3 + $0x28] sm:$0xff]
        %v336 = vld [vmem:[%s3 + $0x30] sm:$0xff]
        %v337 = vld [vmem:[%s3 + $0x38] sm:$0xff]
        %v338 = vld [vmem:[%s4] sm:$0x1]
        %v340 = vperm.slane %v338, 0
        %vm342 = vcmask 523264
        %v344 = vsel %vm342, %v329, 0
        %346 = vmatpush.msra.mxu0 0.0
        %347 = vmatpush.msra.mxu0 0.0
        %348 = vmatpush.msra.mxu0 0.0
        %349 = vmatpush.msra.mxu0 0.0
        %350 = vmatpush.msra.mxu0 0.0
        %351 = vmatpush.msra.mxu0 0.0
        %352 = vmatpush.msra.mxu0 0.0
        %353 = vmatpush.msra.mxu0 0.0
        %354 = vmatpush.msra.mxu0 %v337
        %355 = vmatpush.msra.mxu0 %v336
        %356 = vmatpush.msra.mxu0 %v335
        %357 = vmatpush.msra.mxu0 %v334
        %358 = vmatpush.msra.mxu0 %v333
        %359 = vmatpush.msra.mxu0 %v332
        %360 = vmatpush.msra.mxu0 %v331
        %361 = vmatpush.msra.mxu0 %v330
        %362 = vmatmul.f32.gmra.mxu0 %v344
        %v363 = vpop.f32.mrf.mxu0
        %v364 = vadd.f32 %v340, %v363
        %365 = vdwg.mxu0
        %v366 = vmax.f32 %v364, 0.0
        %v367 = vld [vmem:[%s5] sm:$0xff]
        %v368 = vld [vmem:[%s5 + $0x8] sm:$0xff]
        %v369 = vld [vmem:[%s5 + $0x10] sm:$0xff]
        %v370 = vld [vmem:[%s5 + $0x18] sm:$0xff]
        %v371 = vld [vmem:[%s5 + $0x20] sm:$0xff]
        %v372 = vld [vmem:[%s5 + $0x28] sm:$0xff]
        %v373 = vld [vmem:[%s5 + $0x30] sm:$0xff]
        %v374 = vld [vmem:[%s5 + $0x38] sm:$0xff]
        %v375 = vld [vmem:[%s6] sm:$0x1]
        %v377 = vperm.slane %v375, 0
        %v380 = vsel %vm342, %v366, 0
        %382 = vmatpush.msra.mxu0 0.0
        %383 = vmatpush.msra.mxu0 0.0
        %384 = vmatpush.msra.mxu0 0.0
        %385 = vmatpush.msra.mxu0 0.0
        %386 = vmatpush.msra.mxu0 0.0
        %387 = vmatpush.msra.mxu0 0.0
        %388 = vmatpush.msra.mxu0 0.0
        %389 = vmatpush.msra.mxu0 0.0
        %390 = vmatpush.msra.mxu0 %v374
        %391 = vmatpush.msra.mxu0 %v373
        %392 = vmatpush.msra.mxu0 %v372
        %393 = vmatpush.msra.mxu0 %v371
        %394 = vmatpush.msra.mxu0 %v370
        %395 = vmatpush.msra.mxu0 %v369
        %396 = vmatpush.msra.mxu0 %v368
        %397 = vmatpush.msra.mxu0 %v367
        %398 = vmatmul.f32.gmra.mxu0 %v380
        %v399 = vpop.f32.mrf.mxu0
        %v400 = vadd.f32 %v377, %v399
        %401 = vdwg.mxu0
        %402 = vst.msk [vmem:[%s295] sm:$0xff] %vm305, %v400
        %s403 = sand.u32 %s184, 1
        %s404 = scalar_lea.sflag [#allocation4], %s403
        %s405 = sand.u32 %s184, 1
        %s406 = smul.addr %s405, 8
        %s407 = scalar_lea.vmem [#allocation5], %s406
        // Predicated region
        $region53: #{tpu_custom_call.1} parent=47 // pred_check
          %p408 = pneg %p194
        $region54: #{tpu_custom_call.1} parent=47 // pred_check_branch
          %410 = sbr.rel (%p408) target = $region56
        $region55: #{tpu_custom_call.1} parent=47 // pred_region
          %412 = vsyncadd %s404, 0
          %s413 = smul.addr %s24, 8
          %s414 = scalar_lea.hbm %s7, %s413
          %s416 = sshll.u32 %s407, 4
          %s417 = int_to_ptr.vmem [resolvable:$true] %s416
          %s418 = sshll.u32 %s414, 4
          %s419 = int_to_ptr.hbm [resolvable:$true] %s418
          %421 = dma.vmem_to_hbm [thread:$0]  %s417, 128, %s419, %s404
        $region56: #{tpu_custom_call.1} parent=47 // pred_fallthru
          _
      $region48: #{tpu_custom_call.1} parent=5 // pred_fallthru
        _
      %p422 = scmp.le.s32.totalorder 2, %s19
      // Predicated region
      $region57: #{tpu_custom_call.1} parent=5 // pred_check
        %p423 = pneg %p422
      $region58: #{tpu_custom_call.1} parent=5 // pred_check_branch
        %425 = sbr.rel (%p423) target = $region60
      $region59: #{tpu_custom_call.1} parent=5 // pred_region
        %s426 = ssub.s32 %s19, 2
        // Predicated region
        $region61: #{tpu_custom_call.1} parent=59 // pred_check
          %p427 = pneg %p200
        $region62: #{tpu_custom_call.1} parent=59 // pred_check_branch
          %429 = sbr.rel (%p427) target = $region64
        $region63: #{tpu_custom_call.1} parent=59 // pred_region
          %s430 = sand.u32 %s185, 1
          %s431 = scalar_lea.sflag [#allocation4], %s430
          %s432 = sand.u32 %s185, 1
          %s433 = smul.addr %s432, 8
          %s434 = scalar_lea.vmem [#allocation5], %s433
          %436 = dma.done %s431, 128
        $region64: #{tpu_custom_call.1} parent=59 // pred_fallthru
          _
      $region60: #{tpu_custom_call.1} parent=5 // pred_fallthru
        _
    $region6: #{tpu_custom_call.1} parent=1 // loop_footer
      %s23 = sadd.s32 1, %s19
    $region7: #{tpu_custom_call.1} parent=1 // loop_footer_branch
      %18 = sbr.rel target = $region3
    $region8: #{tpu_custom_call.1} parent=1 // loop_exit
      _
    %437 = vsyncpa [#allocation3], 1
    %s438 = scalar_lea.sflag [#allocation3], 1
    %439 = vsyncpa %s438, 1
    %440 = vsyncpa [#allocation4], 1
    %s441 = scalar_lea.sflag [#allocation4], 1
    %442 = vsyncpa %s441, 1

</llo_original>
